<compile_context>
chip_gen: v7x
topology: tpu7x:2x2x1
jax: 0.10.0
libtpu: 0.0.40
codegen_flags: <defaults>
</compile_context>

<pallas_src>
from functools import partial

import jax
import jax.numpy as jnp
from jax.experimental import pallas as pl
from jax.experimental.pallas import tpu as pltpu

LANES = 128
BLOCK_ROWS = 2048                       # (2048, 128) f32 block = 1 MiB

# ---- chip-aware constants ---------------------------------------------------
try:
    _VMEM_CAP = int(pltpu.get_tpu_info().vmem_capacity_bytes)
except Exception:  # pragma: no cover - conservative fallback
    _VMEM_CAP = 64 * 1024 * 1024

try:
    _IS_V5 = "v5" in jax.devices()[0].device_kind.lower()
except Exception:  # pragma: no cover
    _IS_V5 = False

# Fused path budget: in + out buffers (possibly double-buffered) + f32 temps
# is ~7x the input bytes, so cap the input at ~1/10 of physical VMEM.
_FUSED_LIMIT_BYTES = max(2 * 1024 * 1024, _VMEM_CAP // 10)


def _round_up(a, b):
    return ((a + b - 1) // b) * b


# ---------------------------------------------------------------------------
# Fused single-pass kernel (whole array resident in VMEM).
# ---------------------------------------------------------------------------
def _fused_kernel(x_ref, o_ref, *, qrange):
    x = x_ref[...].astype(jnp.float32)
    s = jnp.float32(qrange) / (x.max() - x.min())
    inv = jnp.float32(1.0) / s          # one scalar divide; <=1 ulp vs per-element '/ s'
    o_ref[...] = (jnp.round(x * s) * inv).astype(o_ref.dtype)
    # TODO(synk): for the upper end of the fused range, pltpu.emit_pipeline over
    # row-tiles would overlap the HBM->VMEM load with the min/max reduction.


# ---------------------------------------------------------------------------
# Tiled pass 1: global min/max, split across a leading size-2 "parallel" axis
# (each TensorCore on v7x reduces half the blocks into its own scratch and
# writes its own (1,1,1) partial; serial and harmless on v5e/v6e).
# ---------------------------------------------------------------------------
def _minmax_kernel(x_ref, min_ref, max_ref, min_sc, max_sc, *,
                   total_rows, block_rows, total_blocks, blocks_per_core,
                   ragged, upcast):
    c = pl.program_id(0)
    j = pl.program_id(1)
    acc_dt = min_sc.dtype

    @pl.when(j == 0)
    def _init():
        min_sc[...] = jnp.full(min_sc.shape, jnp.inf, dtype=acc_dt)
        max_sc[...] = jnp.full(max_sc.shape, -jnp.inf, dtype=acc_dt)

    xt = x_ref[...]
    if upcast:
        xt = xt.astype(jnp.float32)      # bf16 stays native on v6e/v7x (exact min/max)

    if ragged:
        # global block index (clamped duplicates are harmless for min/max)
        blk = jnp.minimum(c * blocks_per_core + j, total_blocks - 1)
        row = blk * block_rows + jax.lax.broadcasted_iota(jnp.int32, xt.shape, 0)
        valid = row < total_rows
        pos_inf = jnp.asarray(jnp.inf, dtype=xt.dtype)
        neg_inf = jnp.asarray(-jnp.inf, dtype=xt.dtype)
        x_lo = jnp.where(valid, xt, pos_inf)
        x_hi = jnp.where(valid, xt, neg_inf)
    else:
        x_lo = xt
        x_hi = xt

    # Fold block_rows -> 8 sublanes with an elementwise (VPU) reduce over the
    # leading axis; no cross-lane (XLU) work in the inner loop.
    min_sc[...] = jnp.minimum(min_sc[...], x_lo.reshape(-1, 8, LANES).min(axis=0))
    max_sc[...] = jnp.maximum(max_sc[...], x_hi.reshape(-1, 8, LANES).max(axis=0))

    @pl.when(j == pl.num_programs(1) - 1)
    def _finalize():
        min_ref[...] = min_sc[...].min(keepdims=True).astype(jnp.float32)[None]
        max_ref[...] = max_sc[...].max(keepdims=True).astype(jnp.float32)[None]


# ---------------------------------------------------------------------------
# Tiled pass 2: elementwise fake quantization; the two per-core partials are
# combined and the scalar scale / reciprocal computed in-kernel (SMEM reads).
# ---------------------------------------------------------------------------
def _quant_kernel(min_ref, max_ref, x_ref, o_ref, *, qrange):
    xmin = jnp.minimum(min_ref[0], min_ref[1])
    xmax = jnp.maximum(max_ref[0], max_ref[1])
    s = jnp.float32(qrange) / (xmax - xmin)
    inv = jnp.float32(1.0) / s           # scalar; avoids per-element f32 divide
    q = jnp.round(x_ref[...].astype(jnp.float32) * s) * inv
    o_ref[...] = q.astype(o_ref.dtype)


# ---------------------------------------------------------------------------
# Wrapper
# ---------------------------------------------------------------------------
def quantize(x, num_bits=8, *, force_tiled=False):
    """Pallas equivalent of Quantize(num_bits).forward(x)."""
    qrange = float(2 ** num_bits - 1)      # (max_val - min_val) with min_val == 0
    orig_shape = x.shape
    dtype = x.dtype
    flat = x.reshape(-1)
    n = flat.shape[0]
    if n == 0:
        return x
    itemsize = jnp.dtype(dtype).itemsize
    nbytes = n * itemsize

    # ---- fused single-pass path: whole array resident in VMEM ----------------
    if nbytes <= _FUSED_LIMIT_BYTES and not force_tiled:
        padf = (-n) % LANES
        if padf:  # pad with an existing value -> min/max unchanged; full (8,128) packing
            flat_p = jnp.concatenate([flat, jnp.full((padf,), flat[0], flat.dtype)])
        else:
            flat_p = flat
        x2d = flat_p.reshape(-1, LANES)
        fused_bytes = int(x2d.size) * itemsize
        vmem_limit = int(min(_VMEM_CAP - (4 << 20),
                             max(32 << 20, 6 * fused_bytes + 4 * int(x2d.size) + (4 << 20))))
        ce = pl.CostEstimate(flops=int(5 * x2d.size), transcendentals=0,
                             bytes_accessed=int(2 * fused_bytes))
        out2d = pl.pallas_call(
            partial(_fused_kernel, qrange=qrange),
            out_shape=jax.ShapeDtypeStruct(x2d.shape, dtype),
            grid_spec=pltpu.PrefetchScalarGridSpec(
                num_scalar_prefetch=0,
                grid=(1,),
                in_specs=[pl.BlockSpec(x2d.shape, lambda i: (0, 0))],
                out_specs=pl.BlockSpec(x2d.shape, lambda i: (0, 0)),
            ),
            compiler_params=pltpu.CompilerParams(
                dimension_semantics=("arbitrary",),
                vmem_limit_bytes=vmem_limit),
            cost_estimate=ce,
        )(x2d)
        out = out2d.reshape(-1)
        if padf:
            out = out[:n]
        return out.reshape(orig_shape)

    # ---- large-input tiled 2-pass path ---------------------------------------
    pad = (-n) % LANES
    if pad:
        # TODO(synk): rare ragged-large case still pays an XLA concatenate copy
        # (+2N HBM bytes); a manual-DMA tail (pl.ANY + pl.ds) would avoid it.
        flat = jnp.concatenate([flat, jnp.full((pad,), flat[0], flat.dtype)])
    x2d = flat.reshape(-1, LANES)
    rows = x2d.shape[0]

    sublane = 8 * max(1, 4 // itemsize)           # 8 (f32), 16 (bf16/f16), 32 (int8/fp8)
    block_rows = BLOCK_ROWS if rows >= BLOCK_ROWS else _round_up(rows, sublane)
    total_blocks = pl.cdiv(rows, block_rows)
    blocks_per_core = pl.cdiv(total_blocks, 2)
    ragged = (rows % block_rows) != 0
    upcast = not (dtype == jnp.bfloat16 and not _IS_V5)
    acc_dtype = jnp.float32 if upcast else dtype

    n_elems = rows * LANES
    ce1 = pl.CostEstimate(flops=int(2 * n_elems), transcendentals=0,
                          bytes_accessed=int(n_elems * itemsize + 16))
    ce2 = pl.CostEstimate(flops=int(3 * n_elems), transcendentals=0,
                          bytes_accessed=int(2 * n_elems * itemsize + 16))

    # pass 1: global min / max (two per-core partials)
    mins, maxs = pl.pallas_call(
        partial(_minmax_kernel, total_rows=rows, block_rows=block_rows,
                total_blocks=total_blocks, blocks_per_core=blocks_per_core,
                ragged=ragged, upcast=upcast),
        out_shape=(
            jax.ShapeDtypeStruct((2, 1, 1), jnp.float32),
            jax.ShapeDtypeStruct((2, 1, 1), jnp.float32),
        ),
        grid_spec=pltpu.PrefetchScalarGridSpec(
            num_scalar_prefetch=0,
            grid=(2, blocks_per_core),
            in_specs=[pl.BlockSpec(
                (block_rows, LANES),
                lambda c, j: (jnp.minimum(c * blocks_per_core + j,
                                          total_blocks - 1), 0))],
            out_specs=(
                pl.BlockSpec((1, 1, 1), lambda c, j: (c, 0, 0)),
                pl.BlockSpec((1, 1, 1), lambda c, j: (c, 0, 0)),
            ),
            scratch_shapes=[
                pltpu.VMEM((8, LANES), acc_dtype),
                pltpu.VMEM((8, LANES), acc_dtype),
            ],
        ),
        compiler_params=pltpu.CompilerParams(
            dimension_semantics=("parallel", "arbitrary")),
        cost_estimate=ce1,
    )(x2d)

    mins = mins.reshape(2)
    maxs = maxs.reshape(2)

    # pass 2: elementwise fake quantization (partials combined in-kernel via SMEM)
    q2d = pl.pallas_call(
        partial(_quant_kernel, qrange=qrange),
        out_shape=jax.ShapeDtypeStruct(x2d.shape, dtype),
        grid_spec=pltpu.PrefetchScalarGridSpec(
            num_scalar_prefetch=0,
            grid=(total_blocks,),
            in_specs=[
                pl.BlockSpec(memory_space=pltpu.MemorySpace.SMEM),
                pl.BlockSpec(memory_space=pltpu.MemorySpace.SMEM),
                pl.BlockSpec((block_rows, LANES), lambda i: (i, 0)),
            ],
            out_specs=pl.BlockSpec((block_rows, LANES), lambda i: (i, 0)),
        ),
        compiler_params=pltpu.CompilerParams(dimension_semantics=("parallel",)),
        cost_estimate=ce2,
    )(mins, maxs, x2d)

    out = q2d.reshape(-1)
    if pad:
        out = out[:n]
    return out.reshape(orig_shape)


def _quantize_ref(x, num_bits=8):
    """Pure-JAX reference mirroring the PyTorch forward."""
    min_val = 0.0
    max_val = 2 ** num_bits - 1
    scale = (max_val - min_val) / (x.max() - x.min())
    return jnp.round(x * scale) / scale


if __name__ == "__main__":
    key = jax.random.PRNGKey(0)
    # NCHW input, as in the PyTorch conv-net context: batch=2, channels=4, 16x16
    x = jax.random.normal(key, (2, 4, 16, 16), dtype=jnp.float32) * 3.0 + 0.5

    ref = _quantize_ref(x, num_bits=8)

    # fused single-pass (VMEM-resident) path — the one this size actually uses
    out = jax.block_until_ready(quantize(x, num_bits=8))
    assert out.shape == x.shape and out.dtype == x.dtype
    assert jnp.allclose(out, ref, atol=1e-5, rtol=1e-5), "fused path mismatch vs reference"

    # also exercise the large-input tiled 2-pass path on the same small input
    out_tiled = jax.block_until_ready(quantize(x, num_bits=8, force_tiled=True))
    assert out_tiled.shape == x.shape and out_tiled.dtype == x.dtype
    assert jnp.allclose(out_tiled, ref, atol=1e-5, rtol=1e-5), "tiled path mismatch vs reference"

    # TODO(synk): RoundSTE backward (straight-through gradient) not implemented — forward only.
    print("KERNEL_OK")
</pallas_src>

<mosaic_0001>
module attributes {stable_mosaic.version = 11 : i64} {
  func.func @_fused_kernel(%arg0: i32, %arg1: memref<16x128xf32, #tpu.memory_space<vmem>>, %arg2: memref<16x128xf32, #tpu.memory_space<vmem>>) attributes {dimension_semantics = [#tpu.dimension_semantics<arbitrary>], iteration_bounds = array<i64: 1>, scalar_prefetch = 0 : i64, scratch_operands = 0 : i64, tpu.core_type = #tpu.core_type<tc>, window_params = [{pipeline_mode = #tpu.pipeline_mode<synchronous>, transform_indices = @transform_0, window_bounds = array<i64: 16, 128>}, {pipeline_mode = #tpu.pipeline_mode<synchronous>, transform_indices = @transform_1, window_bounds = array<i64: 16, 128>}]} {
    %c0 = arith.constant 0 : index
    %c0_0 = arith.constant 0 : index
    %0 = vector.load %arg1[%c0, %c0_0] : memref<16x128xf32, #tpu.memory_space<vmem>>, vector<16x128xf32>
    %1 = vector.shape_cast %0 : vector<16x128xf32> to vector<1x16x128xf32>
    %cst = arith.constant dense<0xFF800000> : vector<1xf32>
    %2 = vector.multi_reduction <maximumf>, %1, %cst [1, 2] : vector<1x16x128xf32> to vector<1xf32>
    %3 = vector.shape_cast %2 : vector<1xf32> to vector<1x1x1xf32>
    %4 = vector.extract %3[0, 0, 0] : f32 from vector<1x1x1xf32>
    %5 = vector.shape_cast %0 : vector<16x128xf32> to vector<1x16x128xf32>
    %cst_1 = arith.constant dense<0x7F800000> : vector<1xf32>
    %6 = vector.multi_reduction <minimumf>, %5, %cst_1 [1, 2] : vector<1x16x128xf32> to vector<1xf32>
    %7 = vector.shape_cast %6 : vector<1xf32> to vector<1x1x1xf32>
    %8 = vector.extract %7[0, 0, 0] : f32 from vector<1x1x1xf32>
    %9 = arith.subf %4, %8 : f32
    %cst_2 = arith.constant 2.550000e+02 : f32
    %10 = arith.divf %cst_2, %9 : f32
    %cst_3 = arith.constant 1.000000e+00 : f32
    %11 = arith.divf %cst_3, %10 : f32
    %12 = vector.broadcast %10 : f32 to vector<16x128xf32>
    %13 = arith.mulf %0, %12 : vector<16x128xf32>
    %14 = math.roundeven %13 : vector<16x128xf32>
    %15 = vector.broadcast %11 : f32 to vector<16x128xf32>
    %16 = arith.mulf %14, %15 : vector<16x128xf32>
    %c0_4 = arith.constant 0 : index
    %c0_5 = arith.constant 0 : index
    %17 = vector.load %arg2[%c0_4, %c0_5] : memref<16x128xf32, #tpu.memory_space<vmem>>, vector<16x128xf32>
    tpu.vector_store %arg2[%c0_4, %c0_5], %16 {strides = array<i32>} : memref<16x128xf32, #tpu.memory_space<vmem>>, vector<16x128xf32>,
    return
  }
  func.func @transform_0(%arg0: i32) -> (i32, i32) {
    %c0_i32 = arith.constant 0 : i32
    %c0_i32_0 = arith.constant 0 : i32
    %c0_i32_1 = arith.constant 0 : i32
    return %c0_i32, %c0_i32_0 : i32, i32
  }
  func.func @transform_1(%arg0: i32) -> (i32, i32) {
    %c0_i32 = arith.constant 0 : i32
    %c0_i32_0 = arith.constant 0 : i32
    %c0_i32_1 = arith.constant 0 : i32
    return %c0_i32, %c0_i32_0 : i32, i32
  }
}

</mosaic_0001>

<llo_original>
// kernel: tpu_custom_call.1
$region0: #{tpu_custom_call.1}
  #allocation0 [shape = 'u32[]', space=smem, size = 0x4, offset = 0x4, fixed_abs, tag = 'smem constant byte address 0x4 - core index']
  #allocation1 [shape = 'u32[144,128]{1,0:T(1,128)}', space=vmem, size = 0x12000, scoped, tag = 'internal scratch']
  %s0 = inlined_call_operand.hbm [shape: f32[16,128], index: 0, kind: input, shape index: {}]
  %s1 = inlined_call_operand.hbm [shape: f32[16,128], index: 1, kind: output, shape index: {}]
  %s2 = sld [smem:[#allocation0]]
  $region18: #{tpu_custom_call.1} parent=0
    _
  %s4 = ssub.s32 1, %s2
  %s5 = scalar_select 0, %s4, %s2
  $region1: #{tpu_custom_call.1} parent=0
    #allocation2 [shape = 'u8[8192]{0}', space=vmem, size = 0x2000, scoped, tag = 'input window, operand 0, single buffered']
    #allocation3 [shape = 's32[1]{0}', space=sflag, size = 0x4, scoped, tag = 'scoped memory for tpu_custom_call.1']
    #allocation4 [shape = 's32[1]{0}', space=sflag, size = 0x4, scoped, tag = 'scoped memory for tpu_custom_call.1']
    #allocation5 [shape = 'u8[8192]{0}', space=vmem, size = 0x2000, scoped, tag = 'output window, operand 0, single buffered']
    %6 = vsyncpa [#allocation3], 0
    %7 = vsyncpa [#allocation4], 0
    // Predicated region
    $region2: #{tpu_custom_call.1} parent=1 // pred_check
      _
    $region3: #{tpu_custom_call.1} parent=1 // pred_check_branch
      %9 = sbr.rel (0) target = $region5
    $region4: #{tpu_custom_call.1} parent=1 // pred_region
      %s11 = ssub.s32 256, 256
      %12 = vsyncadd [#allocation3], %s11
      %s13 = sshll.u32 [#allocation2], 4
      %s14 = int_to_ptr.vmem [resolvable:$true] %s13
      %19 = dma.hbm_to_vmem [thread:$0]  %s0, 256, %s14, [#allocation3], 128, 128, 8
    $region5: #{tpu_custom_call.1} parent=1 // pred_fallthru
      _
    // Predicated region
    $region6: #{tpu_custom_call.1} parent=1 // pred_check
      _
    $region7: #{tpu_custom_call.1} parent=1 // pred_check_branch
      %21 = sbr.rel (0) target = $region9
    $region8: #{tpu_custom_call.1} parent=1 // pred_region
      %22 = dma.done [#allocation3], 256
    $region9: #{tpu_custom_call.1} parent=1 // pred_fallthru
      _
    %v23 = vld [vmem:[#allocation2] sm:$0xff]
    %v24 = vld [vmem:[#allocation2 + $0x8] sm:$0xff]
    %v25 = vmax.f32 %v23, %v24
    %26 = vmax.xlane.f32.xlu0 %v25
    %v27 = vpop.xlane.xlu0 %26
    %v28 = vrot.slane %v27, 4
    %v29 = vmax.f32 %v27, %v28
    %v30 = vrot.slane %v29, 2
    %v31 = vmax.f32 %v29, %v30
    %v32 = vrot.slane %v31, 1
    %v33 = vmax.f32 %v31, %v32
    %s34 = vtos %v33
    %v35 = vmin.f32 %v23, %v24
    %36 = vmin.xlane.f32.xlu0 %v35
    %v37 = vpop.xlane.xlu0 %36
    %v38 = vrot.slane %v37, 4
    %v39 = vmin.f32 %v37, %v38
    %v40 = vrot.slane %v39, 2
    %v41 = vmin.f32 %v39, %v40
    %v42 = vrot.slane %v41, 1
    %v43 = vmin.f32 %v41, %v42
    %s44 = vtos %v43
    %s45 = ssub.f32 %s34, %s44
    %v46 = vstv %s45
    %v47 = vrcp.pop %v46
    %s48 = vtos %v47
    %s49 = smul.f32 255.0, %s48
    %v50 = vstv %s49
    %v51 = vrcp.pop %v50
    %s52 = vtos %v51
    %v53 = vstv %s49
    %v54 = vmul.f32 %v23, %v53
    %v55 = vmul.f32 %v24, %v53
    %v56 = vround.ne.pseudo %v54
    %v57 = vround.ne.pseudo %v55
    %v58 = vstv %s52
    %v59 = vmul.f32 %v56, %v58
    %v60 = vmul.f32 %v57, %v58
    %61 = vst [vmem:[#allocation5] sm:$0xff] %v59
    %62 = vst [vmem:[#allocation5 + $0x8] sm:$0xff] %v60
    // Predicated region
    $region10: #{tpu_custom_call.1} parent=1 // pred_check
      _
    $region11: #{tpu_custom_call.1} parent=1 // pred_check_branch
      %64 = sbr.rel (0) target = $region13
    $region12: #{tpu_custom_call.1} parent=1 // pred_region
      %s66 = ssub.s32 256, 256
      %67 = vsyncadd [#allocation4], %s66
      %s68 = sshll.u32 [#allocation5], 4
      %s69 = int_to_ptr.vmem [resolvable:$true] %s68
      %74 = dma.vmem_to_hbm [thread:$0]  %s69, 256, %s1, [#allocation4], 128, 128, 8
    $region13: #{tpu_custom_call.1} parent=1 // pred_fallthru
      _
    // Predicated region
    $region14: #{tpu_custom_call.1} parent=1 // pred_check
      _
    $region15: #{tpu_custom_call.1} parent=1 // pred_check_branch
      %76 = sbr.rel (0) target = $region17
    $region16: #{tpu_custom_call.1} parent=1 // pred_region
      %77 = dma.done [#allocation4], 256
    $region17: #{tpu_custom_call.1} parent=1 // pred_fallthru
      _
    %78 = vsyncpa [#allocation3], 1
    %79 = vsyncpa [#allocation4], 1

</llo_original>
